<compile_context>
chip_gen: v5e
topology: v5e:2x2
jax: 0.10.0
libtpu: 0.0.40
codegen_flags: <defaults>
</compile_context>

<pallas_src>
import math

import jax
import jax.numpy as jnp
from jax.experimental import pallas as pl
from jax.experimental.pallas import tpu as pltpu


def _make_kernel(L, TL, compute_dtype):
    def kernel(x_ref, halo_ref, w_ref, o_ref):
        """One (batch, L-tile) grid step.

        x_ref    : (TL, C)   sequence tile, rows t = start .. start+TL-1 (input dtype)
        halo_ref : (2, C)    circular halo rows: [0] = x[(start-1) % L],
                             [1] = x[min(start+TL, L) % L]
        w_ref    : (3, C, D) per-tap weights (tap order: t-1, t, t+1), compute dtype
        o_ref    : (TL, D)   output tile
        """
        x_raw = x_ref[...]
        prev_row = halo_ref[0:1, :]
        next_row = halo_ref[1:2, :]
        row = jax.lax.broadcasted_iota(jnp.int32, (TL, 1), 0)

        # Last VALID row of this tile. The grid is cdiv(L, TL): the final tile may be
        # partial; rows past `last` are never written back, so their values don't matter.
        start = pl.program_id(1) * TL
        last = jnp.minimum(TL, L - start) - 1

        # x[t-1]: roll rows down by one, fix row 0 from the halo (circular / tile edge).
        xm1 = jnp.where(row == 0, prev_row, pltpu.roll(x_raw, shift=1, axis=0))
        # x[t+1]: roll rows up by one (shift = TL-1 == -1 mod TL), fix the last valid row.
        xp1 = jnp.where(row == last, next_row, pltpu.roll(x_raw, shift=TL - 1, axis=0))

        cdt = compute_dtype
        # Three accumulating K=C MXU matmuls with f32 accumulation. The shifts run on the
        # XLU / VPU slots, which are otherwise idle in this HBM-bound kernel.
        acc = jnp.dot(xm1.astype(cdt), w_ref[0], preferred_element_type=jnp.float32)
        acc = acc + jnp.dot(x_raw.astype(cdt), w_ref[1], preferred_element_type=jnp.float32)
        acc = acc + jnp.dot(xp1.astype(cdt), w_ref[2], preferred_element_type=jnp.float32)
        o_ref[...] = acc.astype(o_ref.dtype)

    return kernel


def _round_up(n, m):
    return ((n + m - 1) // m) * m


def _vmem_limit_bytes():
    """75% of the per-core VMEM capacity (generation aware); conservative fallback."""
    cap = None
    try:
        info = pltpu.get_tpu_info()
        cap = getattr(info, "vmem_capacity_bytes", None)
    except Exception:
        cap = None
    if not cap:
        cap = 64 * 1024 * 1024       # v7x per-TensorCore VMEM (smallest of v5e/v6e/v7x)
    limit = (int(cap) * 3) // 4      # leave headroom for compiler-internal scratch
    return min(limit, 100 * 1024 * 1024)


def _derive_seq_tile(L, B, C, D, x_bytes, cdt_bytes, out_bytes, vmem_budget, max_seq_tile):
    """Largest granule-aligned sequence tile whose pipeline buffers fit the VMEM budget."""
    gran = 16 if min(x_bytes, cdt_bytes, out_bytes) <= 2 else 8
    if L <= gran:
        return L
    # Per-row VMEM bytes: double-buffered x & out pipeline buffers + in-kernel working
    # copies (two shifted tiles in x dtype, compute-dtype casts, f32 accumulator).
    per_row = (2 * C * x_bytes + 2 * D * out_bytes
               + 2 * C * x_bytes + 3 * C * cdt_bytes + 4 * D)
    budget = vmem_budget // 3        # headroom: weight, halo, vregs, compiler scratch
    tl = budget // max(per_row, 1)
    tl = max(gran, min(tl, 2048, _round_up(L, gran)))
    tl = (tl // gran) * gran
    if max_seq_tile is not None:
        tl = max(gran, min(tl, (max(max_seq_tile, gran) // gran) * gran))
    # v7x megacore: with B == 1, make sure the parallel grid has >= 2 steps so both
    # TensorCores get work.
    if B == 1 and -(-L // tl) < 2:
        tl = max(gran, _round_up(-(-L // 2), gran))
    return tl


def token_embedding(x, weight, *, compute_dtype=None, out_dtype=None, max_seq_tile=None):
    """Circular Conv1d(k=3, pad=1, no bias) token embedding.

    x       : [B, L, C_in]
    weight  : [D, C_in, 3] (PyTorch Conv1d layout)
    returns : [B, L, D] in `out_dtype` (default x.dtype). Matmul operands use
              `compute_dtype` (default x.dtype, cast in-kernel); accumulation is f32.
    """
    B, L, C = x.shape
    D = weight.shape[0]
    if compute_dtype is None:
        compute_dtype = x.dtype
    if out_dtype is None:
        out_dtype = x.dtype

    x_bytes = jnp.dtype(x.dtype).itemsize
    cdt_bytes = jnp.dtype(compute_dtype).itemsize
    out_bytes = jnp.dtype(out_dtype).itemsize

    vmem_limit = _vmem_limit_bytes()
    tl = _derive_seq_tile(L, B, C, D, x_bytes, cdt_bytes, out_bytes, vmem_limit, max_seq_tile)
    n_tiles = pl.cdiv(L, tl)

    # Per-tap weights (taps ordered t-1, t, t+1) in the compute dtype: (3, C, D).
    w_taps = jnp.transpose(weight, (2, 1, 0)).astype(compute_dtype)

    # Tiny per-tile circular halo: the row before the tile start and the row after the
    # tile's last VALID row (handles both the circular wrap and the cdiv tail tile).
    starts = jnp.arange(n_tiles, dtype=jnp.int32) * tl
    prev_idx = (starts - 1) % L
    next_idx = jnp.minimum(starts + tl, L) % L
    halo = jnp.stack([x[:, prev_idx, :], x[:, next_idx, :]], axis=2)   # (B, n_tiles, 2, C)

    x_spec = pl.BlockSpec((None, tl, C), lambda b, l: (b, l, 0))
    halo_spec = pl.BlockSpec((None, None, 2, C), lambda b, l: (b, l, 0, 0))
    # Constant block index -> the (tiny) weight is fetched once and stays VMEM-resident.
    w_spec = pl.BlockSpec((3, C, D), lambda b, l: (0, 0, 0))
    out_spec = pl.BlockSpec((None, tl, D), lambda b, l: (b, l, 0))

    cost = pl.CostEstimate(
        flops=2 * B * L * 3 * C * D,
        transcendentals=0,
        bytes_accessed=(B * L * C * x_bytes              # x
                        + B * n_tiles * 2 * C * x_bytes  # halo
                        + 3 * C * D * cdt_bytes          # weight
                        + B * L * D * out_bytes))        # output

    return pl.pallas_call(
        _make_kernel(L, tl, compute_dtype),
        out_shape=jax.ShapeDtypeStruct((B, L, D), out_dtype),
        grid=(B, n_tiles),
        in_specs=[x_spec, halo_spec, w_spec],
        out_specs=out_spec,
        compiler_params=pltpu.CompilerParams(
            dimension_semantics=("parallel", "parallel"),
            vmem_limit_bytes=vmem_limit,
        ),
        cost_estimate=cost,
    )(x, halo, w_taps)


def _reference(x, weight):
    """Pure-JAX reference of PyTorch's circular Conv1d forward (channels-last)."""
    x_m1 = jnp.roll(x, 1, axis=1)
    x_p1 = jnp.roll(x, -1, axis=1)
    return (jnp.einsum("blc,dc->bld", x_m1, weight[:, :, 0])
            + jnp.einsum("blc,dc->bld", x, weight[:, :, 1])
            + jnp.einsum("blc,dc->bld", x_p1, weight[:, :, 2]))


if __name__ == "__main__":
    B, L, C_IN, D_MODEL = 2, 8, 4, 32

    key = jax.random.PRNGKey(0)
    kx, kw = jax.random.split(key)

    x = jax.random.normal(kx, (B, L, C_IN), dtype=jnp.float32)

    # Deterministic kaiming_normal_(mode='fan_in', nonlinearity='leaky_relu') init.
    # Conv1d weight shape: (out_channels, in_channels, kernel_size) = (D, C_in, 3)
    fan_in = C_IN * 3
    neg_slope = 0.01
    gain = math.sqrt(2.0 / (1.0 + neg_slope ** 2))
    std = gain / math.sqrt(fan_in)
    weight = std * jax.random.normal(kw, (D_MODEL, C_IN, 3), dtype=jnp.float32)

    # 1) f32 path, single L tile.
    y = token_embedding(x, weight)
    jax.block_until_ready(y)
    y_ref = _reference(x, weight)
    assert y.shape == (B, L, D_MODEL)
    assert jnp.allclose(y, y_ref, atol=1e-5, rtol=1e-5), "f32 mismatch vs reference"

    # 2) bf16 operands (cast in-kernel) + bf16 output, f32 accumulation.
    y_bf16 = token_embedding(x, weight, compute_dtype=jnp.bfloat16, out_dtype=jnp.bfloat16)
    jax.block_until_ready(y_bf16)
    assert y_bf16.dtype == jnp.bfloat16
    y_ref_bf16 = _reference(x.astype(jnp.bfloat16).astype(jnp.float32),
                            weight.astype(jnp.bfloat16).astype(jnp.float32))
    assert jnp.allclose(y_bf16.astype(jnp.float32), y_ref_bf16,
                        atol=3e-2, rtol=3e-2), "bf16 mismatch vs reference"

    # 3) Multi-tile with L NOT divisible by the tile (cdiv grid + tail fix-up + halo).
    L2 = 20
    x2 = jax.random.normal(kx, (B, L2, C_IN), dtype=jnp.float32)
    y2 = token_embedding(x2, weight, max_seq_tile=8)
    jax.block_until_ready(y2)
    assert jnp.allclose(y2, _reference(x2, weight), atol=1e-5, rtol=1e-5), "tail mismatch"

    # 4) B == 1: tile is split so the parallel grid has >= 2 steps (v7x megacore).
    x3 = jax.random.normal(kx, (1, 32, C_IN), dtype=jnp.float32)
    y3 = token_embedding(x3, weight)
    jax.block_until_ready(y3)
    assert jnp.allclose(y3, _reference(x3, weight), atol=1e-5, rtol=1e-5), "B=1 mismatch"

    print("KERNEL_OK")
</pallas_src>

<mosaic_0001>
module attributes {stable_mosaic.version = 11 : i64} {
  func.func @kernel(%arg0: i32, %arg1: i32, %arg2: memref<1x8x4xf32, #tpu.memory_space<vmem>>, %arg3: memref<1x1x2x4xf32, #tpu.memory_space<vmem>>, %arg4: memref<3x4x32xf32, #tpu.memory_space<vmem>>, %arg5: memref<1x8x32xf32, #tpu.memory_space<vmem>>) attributes {dimension_semantics = [#tpu.dimension_semantics<parallel>, #tpu.dimension_semantics<parallel>], iteration_bounds = array<i64: 2, 1>, scalar_prefetch = 0 : i64, scratch_operands = 0 : i64, tpu.core_type = #tpu.core_type<tc>, window_params = [{transform_indices = @transform_0, window_bounds = array<i64: 1, 8, 4>}, {transform_indices = @transform_1, window_bounds = array<i64: 1, 1, 2, 4>}, {pipeline_mode = #tpu.pipeline_mode<synchronous>, transform_indices = @transform_2, window_bounds = array<i64: 3, 4, 32>}, {transform_indices = @transform_3, window_bounds = array<i64: 1, 8, 32>}]} {
    %c0 = arith.constant 0 : index
    %c0_0 = arith.constant 0 : index
    %c0_1 = arith.constant 0 : index
    %0 = vector.load %arg2[%c0, %c0_0, %c0_1] : memref<1x8x4xf32, #tpu.memory_space<vmem>>, vector<1x8x4xf32>
    %1 = vector.shape_cast %0 : vector<1x8x4xf32> to vector<8x4xf32>
    %c0_2 = arith.constant 0 : index
    %c0_3 = arith.constant 0 : index
    %c0_4 = arith.constant 0 : index
    %c0_5 = arith.constant 0 : index
    %2 = vector.load %arg3[%c0_2, %c0_3, %c0_4, %c0_5] : memref<1x1x2x4xf32, #tpu.memory_space<vmem>>, vector<1x1x1x4xf32>
    %3 = vector.shape_cast %2 : vector<1x1x1x4xf32> to vector<1x4xf32>
    %c0_6 = arith.constant 0 : index
    %c0_7 = arith.constant 0 : index
    %c1 = arith.constant 1 : index
    %c0_8 = arith.constant 0 : index
    %4 = vector.load %arg3[%c0_6, %c0_7, %c1, %c0_8] : memref<1x1x2x4xf32, #tpu.memory_space<vmem>>, vector<1x1x1x4xf32>
    %5 = vector.shape_cast %4 : vector<1x1x1x4xf32> to vector<1x4xf32>
    %6 = tpu.iota {dimensions = array<i32: 0>} : vector<8x1xi32>
    %c8_i32 = arith.constant 8 : i32
    %7 = arith.muli %arg1, %c8_i32 : i32
    %c8_i32_9 = arith.constant 8 : i32
    %8 = arith.subi %c8_i32_9, %7 : i32
    %c8_i32_10 = arith.constant 8 : i32
    %9 = arith.minsi %c8_i32_10, %8 : i32
    %c1_i32 = arith.constant 1 : i32
    %10 = arith.subi %9, %c1_i32 : i32
    %c0_i32 = arith.constant 0 : i32
    %11 = vector.broadcast %c0_i32 : i32 to vector<8x1xi32>
    %12 = arith.cmpi eq, %6, %11 : vector<8x1xi32>
    %c1_i32_11 = arith.constant 1 : i32
    %13 = tpu.dynamic_rotate %1 by %c1_i32_11 dim 0 : vector<8x4xf32>, i32 -> vector<8x4xf32>
    %14 = vector.shape_cast %12 : vector<8x1xi1> to vector<8x1xi1>
    %15 = vector.broadcast %14 : vector<8x1xi1> to vector<8x4xi1>
    %16 = vector.shape_cast %3 : vector<1x4xf32> to vector<1x4xf32>
    %17 = vector.broadcast %16 : vector<1x4xf32> to vector<8x4xf32>
    %18 = arith.select %15, %17, %13 : vector<8x4xi1>, vector<8x4xf32>
    %19 = vector.broadcast %10 : i32 to vector<8x1xi32>
    %20 = arith.cmpi eq, %6, %19 : vector<8x1xi32>
    %c7_i32 = arith.constant 7 : i32
    %21 = tpu.dynamic_rotate %1 by %c7_i32 dim 0 : vector<8x4xf32>, i32 -> vector<8x4xf32>
    %22 = vector.shape_cast %20 : vector<8x1xi1> to vector<8x1xi1>
    %23 = vector.broadcast %22 : vector<8x1xi1> to vector<8x4xi1>
    %24 = vector.shape_cast %5 : vector<1x4xf32> to vector<1x4xf32>
    %25 = vector.broadcast %24 : vector<1x4xf32> to vector<8x4xf32>
    %26 = arith.select %23, %25, %21 : vector<8x4xi1>, vector<8x4xf32>
    %c0_12 = arith.constant 0 : index
    %c0_13 = arith.constant 0 : index
    %c0_14 = arith.constant 0 : index
    %27 = vector.load %arg4[%c0_12, %c0_13, %c0_14] : memref<3x4x32xf32, #tpu.memory_space<vmem>>, vector<1x4x32xf32>
    %28 = vector.shape_cast %27 : vector<1x4x32xf32> to vector<4x32xf32>
    %cst = arith.constant dense<0.000000e+00> : vector<8x32xf32>
    %29 = tpu.matmul %18, %28, %cst {dimension_numbers = #tpu.dot_dimension_numbers<[1], [0], [0], [1], [0, 0, 1, 1], [], []>} : vector<8x4xf32>, vector<4x32xf32>, vector<8x32xf32> -> vector<8x32xf32>
    %c1_15 = arith.constant 1 : index
    %c0_16 = arith.constant 0 : index
    %c0_17 = arith.constant 0 : index
    %30 = vector.load %arg4[%c1_15, %c0_16, %c0_17] : memref<3x4x32xf32, #tpu.memory_space<vmem>>, vector<1x4x32xf32>
    %31 = vector.shape_cast %30 : vector<1x4x32xf32> to vector<4x32xf32>
    %cst_18 = arith.constant dense<0.000000e+00> : vector<8x32xf32>
    %32 = tpu.matmul %1, %31, %cst_18 {dimension_numbers = #tpu.dot_dimension_numbers<[1], [0], [0], [1], [0, 0, 1, 1], [], []>} : vector<8x4xf32>, vector<4x32xf32>, vector<8x32xf32> -> vector<8x32xf32>
    %33 = arith.addf %29, %32 : vector<8x32xf32>
    %c2 = arith.constant 2 : index
    %c0_19 = arith.constant 0 : index
    %c0_20 = arith.constant 0 : index
    %34 = vector.load %arg4[%c2, %c0_19, %c0_20] : memref<3x4x32xf32, #tpu.memory_space<vmem>>, vector<1x4x32xf32>
    %35 = vector.shape_cast %34 : vector<1x4x32xf32> to vector<4x32xf32>
    %cst_21 = arith.constant dense<0.000000e+00> : vector<8x32xf32>
    %36 = tpu.matmul %26, %35, %cst_21 {dimension_numbers = #tpu.dot_dimension_numbers<[1], [0], [0], [1], [0, 0, 1, 1], [], []>} : vector<8x4xf32>, vector<4x32xf32>, vector<8x32xf32> -> vector<8x32xf32>
    %37 = arith.addf %33, %36 : vector<8x32xf32>
    %c0_22 = arith.constant 0 : index
    %c0_23 = arith.constant 0 : index
    %c0_24 = arith.constant 0 : index
    %38 = vector.load %arg5[%c0_22, %c0_23, %c0_24] : memref<1x8x32xf32, #tpu.memory_space<vmem>>, vector<1x8x32xf32>
    %39 = vector.shape_cast %38 : vector<1x8x32xf32> to vector<8x32xf32>
    %40 = vector.shape_cast %37 : vector<8x32xf32> to vector<1x8x32xf32>
    tpu.vector_store %arg5[%c0_22, %c0_23, %c0_24], %40 {strides = array<i32>} : memref<1x8x32xf32, #tpu.memory_space<vmem>>, vector<1x8x32xf32>,
    return
  }
  func.func @transform_0(%arg0: i32, %arg1: i32) -> (i32, i32, i32) {
    %c0_i32 = arith.constant 0 : i32
    %c0_i32_0 = arith.constant 0 : i32
    return %arg0, %arg1, %c0_i32 : i32, i32, i32
  }
  func.func @transform_1(%arg0: i32, %arg1: i32) -> (i32, i32, i32, i32) {
    %c0_i32 = arith.constant 0 : i32
    %c0_i32_0 = arith.constant 0 : i32
    %c0_i32_1 = arith.constant 0 : i32
    return %arg0, %arg1, %c0_i32, %c0_i32_0 : i32, i32, i32, i32
  }
  func.func @transform_2(%arg0: i32, %arg1: i32) -> (i32, i32, i32) {
    %c0_i32 = arith.constant 0 : i32
    %c0_i32_0 = arith.constant 0 : i32
    %c0_i32_1 = arith.constant 0 : i32
    %c0_i32_2 = arith.constant 0 : i32
    return %c0_i32, %c0_i32_0, %c0_i32_1 : i32, i32, i32
  }
  func.func @transform_3(%arg0: i32, %arg1: i32) -> (i32, i32, i32) {
    %c0_i32 = arith.constant 0 : i32
    %c0_i32_0 = arith.constant 0 : i32
    return %arg0, %arg1, %c0_i32 : i32, i32, i32
  }
}

</mosaic_0001>

<llo_original>
// kernel: tpu_custom_call.1
$region0: #{tpu_custom_call.1}
  #allocation0 [shape = 'u32[]', space=smem, size = 0x4, offset = 0x4, fixed_abs, tag = 'smem constant byte address 0x4 - core index']
  #allocation1 [shape = 'u32[72,128]{1,0:T(1,128)}', space=vmem, size = 0x9000, scoped, tag = 'internal scratch']
  %s0 = inlined_call_operand.vmem [shape: f32[2,8,4], index: 0, kind: input, shape index: {}]
  %s1 = inlined_call_operand.vmem [shape: f32[2,1,2,4], index: 1, kind: input, shape index: {}]
  %s2 = inlined_call_operand.vmem [shape: f32[3,4,32], index: 2, kind: input, shape index: {}]
  %s3 = inlined_call_operand.hbm [shape: f32[2,8,32], index: 3, kind: output, shape index: {}]
  %s4 = sld [smem:[#allocation0]]
  $region45: #{tpu_custom_call.1} parent=0
    _
  %s6 = ssub.s32 1, %s4
  %s7 = scalar_select 0, %s6, %s4
  $region1: #{tpu_custom_call.1} parent=0
    #allocation2 [shape = 'u8[8192]{0}', space=vmem, size = 0x2000, scoped, tag = 'output window, operand 0']
    #allocation3 [shape = 's32[2]{0}', space=sflag, size = 0x8, scoped, tag = 'scoped memory for tpu_custom_call.1']
    %8 = vsyncpa [#allocation3], 0
    %s9 = scalar_lea.sflag [#allocation3], 1
    %10 = vsyncpa %s9, 0
    loop: start=0, step=1, limit=4
    $region2: #{tpu_custom_call.1} parent=1 // loop_pre_header
      _
    $region3: #{tpu_custom_call.1} parent=1 // loop_header
      %s12 = sphi 0, %s16
      %p13 = scmp.ge.s32.totalorder %s12, 4
      %s19 = sphi 0, %s31
      %s20 = sphi 0, %s27
      %s21 = sphi 0, %s19
      %s22 = sphi 0, %s20
      %s23 = sphi 0, %s21
      %s24 = sphi 0, %s22
      %s36 = sphi 0, %s38
      %s39 = sphi 0, %s36
      %s40 = sphi 0, %s39
      %s56 = sphi 0, %s40
      %s64 = sphi 0, %s66
      %s67 = sphi 0, %s64
      %s68 = sphi 0, %s67
      %s84 = sphi 0, %s68
      %s88 = sphi 0, %s88
      %s90 = sphi 0, %s88
      %s91 = sphi 0, %s90
      %s105 = sphi 0, %s91
      %s113 = sphi 0, %s115
      %s116 = sphi 0, %s113
      %s117 = sphi 0, %s116
      %s133 = sphi 0, %s117
    $region4: #{tpu_custom_call.1} parent=1 // loop_header_branch
      %15 = sbr.rel (%p13) target = $region8
    $region5: #{tpu_custom_call.1} parent=1 // loop_body
      %s17 = ssub.s32 %s12, 1
      %s18 = ssub.s32 %s12, 2
      %s25 = sadd.s32 1, %s20
      %p26 = scmp.ge.s32.totalorder %s25, 1
      %s27 = scalar_select %p26, 0, %s25
      %s28 = sadd.s32 1, %s19
      %s29 = scalar_select %p26, %s28, %s19
      %p30 = scmp.ge.s32.totalorder %s29, 2
      %s31 = scalar_select %p30, 0, %s29
      %s32 = ssub.s32 %s19, %s31
      %s33 = ssub.s32 %s20, %s27
      %s34 = sor.u32 %s32, %s33
      %p35 = scmp.eq.s32.totalorder %s34, 0
      %s37 = sadd.s32 %s36, 1
      %s38 = scalar_select %p35, %s36, %s37
      %p41 = pneg %p35
      %p42 = scmp.eq.s32.totalorder %s12, 1
      %p43 = por %p41, %p42
      %p44 = scmp.ne.s32.totalorder %s36, %s39
      %p45 = scmp.eq.s32.totalorder %s12, 0
      %p46 = por %p44, %p45
      %p47 = scmp.ne.s32.totalorder %s36, %s39
      %p48 = scmp.eq.s32.totalorder %s17, 1
      %p49 = por %p47, %p48
      %p50 = scmp.ne.s32.totalorder %s39, %s40
      %p51 = scmp.eq.s32.totalorder %s17, 0
      %p52 = por %p50, %p51
      %p53 = scmp.ne.s32.totalorder %s39, %s40
      %p54 = scmp.eq.s32.totalorder %s18, 1
      %p55 = por %p53, %p54
      %p57 = scmp.ne.s32.totalorder %s40, %s56
      %p58 = scmp.eq.s32.totalorder %s18, 0
      %p59 = por %p57, %p58
      %s60 = ssub.s32 %s19, %s31
      %s61 = ssub.s32 %s20, %s27
      %s62 = sor.u32 %s60, %s61
      %p63 = scmp.eq.s32.totalorder %s62, 0
      %s65 = sadd.s32 %s64, 1
      %s66 = scalar_select %p63, %s64, %s65
      %p69 = pneg %p63
      %p70 = scmp.eq.s32.totalorder %s12, 1
      %p71 = por %p69, %p70
      %p72 = scmp.ne.s32.totalorder %s64, %s67
      %p73 = scmp.eq.s32.totalorder %s12, 0
      %p74 = por %p72, %p73
      %p75 = scmp.ne.s32.totalorder %s64, %s67
      %p76 = scmp.eq.s32.totalorder %s17, 1
      %p77 = por %p75, %p76
      %p78 = scmp.ne.s32.totalorder %s67, %s68
      %p79 = scmp.eq.s32.totalorder %s17, 0
      %p80 = por %p78, %p79
      %p81 = scmp.ne.s32.totalorder %s67, %s68
      %p82 = scmp.eq.s32.totalorder %s18, 1
      %p83 = por %p81, %p82
      %p85 = scmp.ne.s32.totalorder %s68, %s84
      %p86 = scmp.eq.s32.totalorder %s18, 0
      %p87 = por %p85, %p86
      %s89 = sadd.s32 %s88, 1
      %p92 = scmp.eq.s32.totalorder %s12, 1
      %p93 = scmp.ne.s32.totalorder %s88, %s90
      %p94 = scmp.eq.s32.totalorder %s12, 0
      %p95 = por %p93, %p94
      %p96 = scmp.ne.s32.totalorder %s88, %s90
      %p97 = scmp.eq.s32.totalorder %s17, 1
      %p98 = por %p96, %p97
      %p99 = scmp.ne.s32.totalorder %s90, %s91
      %p100 = scmp.eq.s32.totalorder %s17, 0
      %p101 = por %p99, %p100
      %p102 = scmp.ne.s32.totalorder %s90, %s91
      %p103 = scmp.eq.s32.totalorder %s18, 1
      %p104 = por %p102, %p103
      %p106 = scmp.ne.s32.totalorder %s91, %s105
      %p107 = scmp.eq.s32.totalorder %s18, 0
      %p108 = por %p106, %p107
      %s109 = ssub.s32 %s19, %s31
      %s110 = ssub.s32 %s20, %s27
      %s111 = sor.u32 %s109, %s110
      %p112 = scmp.eq.s32.totalorder %s111, 0
      %s114 = sadd.s32 %s113, 1
      %s115 = scalar_select %p112, %s113, %s114
      %p118 = pneg %p112
      %p119 = scmp.eq.s32.totalorder %s12, 1
      %p120 = por %p118, %p119
      %p121 = scmp.ne.s32.totalorder %s113, %s116
      %p122 = scmp.eq.s32.totalorder %s12, 0
      %p123 = por %p121, %p122
      %p124 = scmp.ne.s32.totalorder %s113, %s116
      %p125 = scmp.eq.s32.totalorder %s17, 1
      %p126 = por %p124, %p125
      %p127 = scmp.ne.s32.totalorder %s116, %s117
      %p128 = scmp.eq.s32.totalorder %s17, 0
      %p129 = por %p127, %p128
      %p130 = scmp.ne.s32.totalorder %s116, %s117
      %p131 = scmp.eq.s32.totalorder %s18, 1
      %p132 = por %p130, %p131
      %p134 = scmp.ne.s32.totalorder %s117, %s133
      %p135 = scmp.eq.s32.totalorder %s18, 0
      %p136 = por %p134, %p135
      %p137 = scmp.le.s32.totalorder 1, %s12
      %p138 = scmp.lt.s32.totalorder %s12, 3
      %p139 = pnand %p137, %p138
      %p140 = pneg %p139
      // Predicated region
      $region9: #{tpu_custom_call.1} parent=5 // pred_check
        _
      $region10: #{tpu_custom_call.1} parent=5 // pred_check_branch
        %142 = sbr.rel (%p139) target = $region12
      $region11: #{tpu_custom_call.1} parent=5 // pred_region
        %s143 = ssub.s32 %s12, 1
        // Predicated region
        $region13: #{tpu_custom_call.1} parent=11 // pred_check
          %p144 = pneg %p101
        $region14: #{tpu_custom_call.1} parent=11 // pred_check_branch
          %146 = sbr.rel (%p144) target = $region16
        $region15: #{tpu_custom_call.1} parent=11 // pred_region
          _
        $region16: #{tpu_custom_call.1} parent=11 // pred_fallthru
          _
      $region12: #{tpu_custom_call.1} parent=5 // pred_fallthru
        _
      %p147 = scmp.lt.s32.totalorder %s12, 2
      // Predicated region
      $region17: #{tpu_custom_call.1} parent=5 // pred_check
        %p148 = pneg %p147
      $region18: #{tpu_custom_call.1} parent=5 // pred_check_branch
        %150 = sbr.rel (%p148) target = $region20
      $region19: #{tpu_custom_call.1} parent=5 // pred_region
        // Predicated region
        $region21: #{tpu_custom_call.1} parent=19 // pred_check
          %p151 = pneg %p46
        $region22: #{tpu_custom_call.1} parent=19 // pred_check_branch
          %153 = sbr.rel (%p151) target = $region24
        $region23: #{tpu_custom_call.1} parent=19 // pred_region
          %p154 = scmp.lt.s32.totalorder %s19, 1
          %s155 = scalar_select %p154, %s19, 1
          %p156 = scmp.lt.s32.totalorder %s20, 0
          %s157 = scalar_select %p156, %s20, 0
          %s158 = sadd.s32 %s157, %s155
          %s159 = smul.addr %s158, 8
          %s160 = scalar_lea.vmem %s0, %s159
        $region24: #{tpu_custom_call.1} parent=19 // pred_fallthru
          _
        // Predicated region
        $region25: #{tpu_custom_call.1} parent=19 // pred_check
          %p161 = pneg %p74
        $region26: #{tpu_custom_call.1} parent=19 // pred_check_branch
          %163 = sbr.rel (%p161) target = $region28
        $region27: #{tpu_custom_call.1} parent=19 // pred_region
          %p164 = scmp.lt.s32.totalorder %s19, 1
          %s165 = scalar_select %p164, %s19, 1
          %p166 = scmp.lt.s32.totalorder %s20, 0
          %s167 = scalar_select %p166, %s20, 0
          %s168 = sadd.s32 %s167, %s165
          %s169 = smul.addr %s168, 2
          %s170 = scalar_lea.vmem %s1, %s169
        $region28: #{tpu_custom_call.1} parent=19 // pred_fallthru
          _
      $region20: #{tpu_custom_call.1} parent=5 // pred_fallthru
        _
      %p171 = scmp.le.s32.totalorder 1, %s12
      %p172 = scmp.lt.s32.totalorder %s12, 3
      %p173 = pnand %p171, %p172
      %p174 = pneg %p173
      // Predicated region
      $region29: #{tpu_custom_call.1} parent=5 // pred_check
        _
      $region30: #{tpu_custom_call.1} parent=5 // pred_check_branch
        %176 = sbr.rel (%p173) target = $region32
      $region31: #{tpu_custom_call.1} parent=5 // pred_region
        %s177 = ssub.s32 %s12, 1
        %p178 = scmp.lt.s32.totalorder %s21, 1
        %s179 = scalar_select %p178, %s21, 1
        %p180 = scmp.lt.s32.totalorder %s22, 0
        %s181 = scalar_select %p180, %s22, 0
        %s182 = sadd.s32 %s181, %s179
        %s183 = smul.addr %s182, 8
        %s184 = scalar_lea.vmem %s0, %s183
        %p185 = pneg %p52
        %p186 = pneg %p49
        %p187 = scmp.lt.s32.totalorder %s21, 1
        %s188 = scalar_select %p187, %s21, 1
        %p189 = scmp.lt.s32.totalorder %s22, 0
        %s190 = scalar_select %p189, %s22, 0
        %s191 = sadd.s32 %s190, %s188
        %s192 = smul.addr %s191, 2
        %s193 = scalar_lea.vmem %s1, %s192
        %p194 = pneg %p80
        %p195 = pneg %p77
        %p196 = pneg %p101
        %p197 = pneg %p98
        %p198 = pneg %p129
        %p199 = pneg %p126
        %s200 = sand.u32 %s116, 1
        %s201 = scalar_lea.sflag [#allocation3], %s200
        %s202 = sand.u32 %s116, 1
        %s203 = smul.addr %s202, 8
        %s204 = scalar_lea.vmem [#allocation2], %s203
        %p205 = scmp.lt.s32.totalorder %s21, 1
        %s206 = scalar_select %p205, %s21, 1
        %p207 = scmp.lt.s32.totalorder %s22, 0
        %s208 = scalar_select %p207, %s22, 0
        %s209 = sadd.s32 %s208, %s206
        %s210 = smul.addr %s209, 8
        %s211 = scalar_lea.vmem %s0, %s210
        %p212 = scmp.lt.s32.totalorder %s21, 1
        %s213 = scalar_select %p212, %s21, 1
        %p214 = scmp.lt.s32.totalorder %s22, 0
        %s215 = scalar_select %p214, %s22, 0
        %s216 = sadd.s32 %s215, %s213
        %s217 = smul.addr %s216, 2
        %s218 = scalar_lea.vmem %s1, %s217
        %v219 = vld [vmem:[%s211] sm:$0xff]
        %v220 = vld [vmem:[%s218] sm:$0x1]
        %v221 = vld [vmem:[%s218 + $0x1] sm:$0x1]
        %v222 = vlaneseq
        %v223 = vshrl.u32 %v222, 7
        %s224 = smul.u32 %s22, 8
        %s225 = ssub.s32 8, %s224
        %p226 = scmp.lt.s32.totalorder %s225, 8
        %s227 = scalar_select %p226, %s225, 8
        %s228 = ssub.s32 %s227, 1
        %vm229 = vcmp.eq.s32.totalorder %v223, 0
        %v230 = vrot.slane %v219, 7
        %v231 = vsel %vm229, 1, 0
        %vm232 = vcmp.eq.s32.totalorder %v231, 1
        %v233 = vperm.slane %v220, 0
        %v234 = vsel %vm232, %v233, %v230
        %v235 = vstv %s228
        %vm236 = vcmp.eq.s32.totalorder %v223, %v235
        %v237 = vrot.slane %v219, 1
        %v238 = vsel %vm236, 1, 0
        %vm239 = vcmp.eq.s32.totalorder %v238, 1
        %v240 = vperm.slane %v221, 0
        %v241 = vsel %vm239, %v240, %v237
        %v242 = vld [vmem:[%s2] sm:$0xf]
        %s243 = scalar_lea.vmem %s2, 4
        %v244 = vld [vmem:[%s243] sm:$0xf]
        %vm245 = vcmask 31744
        %v247 = vsel %vm245, %v219, 0
        %vm249 = vcmask 1043456
        %v251 = vsel %vm249, %v244, 0
        %253 = vmatpush.msra.mxu0 0.0
        %254 = vmatpush.msra.mxu0 0.0
        %255 = vmatpush.msra.mxu0 0.0
        %256 = vmatpush.msra.mxu0 0.0
        %257 = vmatpush.msra.mxu0 0.0
        %258 = vmatpush.msra.mxu0 0.0
        %259 = vmatpush.msra.mxu0 0.0
        %260 = vmatpush.msra.mxu0 0.0
        %261 = vmatpush.msra.mxu0 0.0
        %262 = vmatpush.msra.mxu0 0.0
        %263 = vmatpush.msra.mxu0 0.0
        %264 = vmatpush.msra.mxu0 0.0
        %265 = vmatpush.msra.mxu0 0.0
        %266 = vmatpush.msra.mxu0 0.0
        %267 = vmatpush.msra.mxu0 0.0
        %268 = vmatpush.msra.mxu0 %v251
        %269 = vmatmul.f32.gmra.mxu0 %v247
        %v270 = vpop.f32.mrf.mxu0
        %v271 = vadd.f32 0.0, %v270
        %272 = vdwg.mxu0
        %v274 = vsel %vm245, %v234, 0
        %v277 = vsel %vm249, %v242, 0
        %279 = vmatpush.msra.mxu0 0.0
        %280 = vmatpush.msra.mxu0 0.0
        %281 = vmatpush.msra.mxu0 0.0
        %282 = vmatpush.msra.mxu0 0.0
        %283 = vmatpush.msra.mxu0 0.0
        %284 = vmatpush.msra.mxu0 0.0
        %285 = vmatpush.msra.mxu0 0.0
        %286 = vmatpush.msra.mxu0 0.0
        %287 = vmatpush.msra.mxu0 0.0
        %288 = vmatpush.msra.mxu0 0.0
        %289 = vmatpush.msra.mxu0 0.0
        %290 = vmatpush.msra.mxu0 0.0
        %291 = vmatpush.msra.mxu0 0.0
        %292 = vmatpush.msra.mxu0 0.0
        %293 = vmatpush.msra.mxu0 0.0
        %294 = vmatpush.msra.mxu0 %v277
        %295 = vmatmul.f32.gmra.mxu0 %v274
        %v296 = vpop.f32.mrf.mxu0
        %v297 = vadd.f32 %v271, %v296
        %298 = vdwg.mxu0
        %s299 = scalar_lea.vmem %s2, 8
        %v300 = vld [vmem:[%s299] sm:$0xf]
        %v302 = vsel %vm245, %v241, 0
        %v305 = vsel %vm249, %v300, 0
        %307 = vmatpush.msra.mxu0 0.0
        %308 = vmatpush.msra.mxu0 0.0
        %309 = vmatpush.msra.mxu0 0.0
        %310 = vmatpush.msra.mxu0 0.0
        %311 = vmatpush.msra.mxu0 0.0
        %312 = vmatpush.msra.mxu0 0.0
        %313 = vmatpush.msra.mxu0 0.0
        %314 = vmatpush.msra.mxu0 0.0
        %315 = vmatpush.msra.mxu0 0.0
        %316 = vmatpush.msra.mxu0 0.0
        %317 = vmatpush.msra.mxu0 0.0
        %318 = vmatpush.msra.mxu0 0.0
        %319 = vmatpush.msra.mxu0 0.0
        %320 = vmatpush.msra.mxu0 0.0
        %321 = vmatpush.msra.mxu0 0.0
        %322 = vmatpush.msra.mxu0 %v305
        %323 = vmatmul.f32.gmra.mxu0 %v302
        %v324 = vpop.f32.mrf.mxu0
        %v325 = vadd.f32 0.0, %v324
        %326 = vdwg.mxu0
        %v327 = vadd.f32 %v297, %v325
        %vm328 = vcmask 261120
        %329 = vst.msk [vmem:[%s204] sm:$0xff] %vm328, %v327
        %s330 = sand.u32 %s116, 1
        %s331 = scalar_lea.sflag [#allocation3], %s330
        %s332 = sand.u32 %s116, 1
        %s333 = smul.addr %s332, 8
        %s334 = scalar_lea.vmem [#allocation2], %s333
        // Predicated region
        $region33: #{tpu_custom_call.1} parent=31 // pred_check
          %p335 = pneg %p126
        $region34: #{tpu_custom_call.1} parent=31 // pred_check_branch
          %337 = sbr.rel (%p335) target = $region36
        $region35: #{tpu_custom_call.1} parent=31 // pred_region
          %339 = vsyncadd %s331, 0
          %s340 = sadd.s32 %s22, %s21
          %s341 = smul.addr %s340, 8
          %s342 = scalar_lea.hbm %s3, %s341
          %s344 = sshll.u32 %s334, 4
          %s345 = int_to_ptr.vmem [resolvable:$true] %s344
          %s346 = sshll.u32 %s342, 4
          %s347 = int_to_ptr.hbm [resolvable:$true] %s346
          %349 = dma.vmem_to_hbm [thread:$0]  %s345, 128, %s347, %s331
        $region36: #{tpu_custom_call.1} parent=31 // pred_fallthru
          _
      $region32: #{tpu_custom_call.1} parent=5 // pred_fallthru
        _
      %p350 = scmp.le.s32.totalorder 2, %s12
      // Predicated region
      $region37: #{tpu_custom_call.1} parent=5 // pred_check
        %p351 = pneg %p350
      $region38: #{tpu_custom_call.1} parent=5 // pred_check_branch
        %353 = sbr.rel (%p351) target = $region40
      $region39: #{tpu_custom_call.1} parent=5 // pred_region
        %s354 = ssub.s32 %s12, 2
        // Predicated region
        $region41: #{tpu_custom_call.1} parent=39 // pred_check
          %p355 = pneg %p132
        $region42: #{tpu_custom_call.1} parent=39 // pred_check_branch
          %357 = sbr.rel (%p355) target = $region44
        $region43: #{tpu_custom_call.1} parent=39 // pred_region
          %s358 = sand.u32 %s117, 1
          %s359 = scalar_lea.sflag [#allocation3], %s358
          %s360 = sand.u32 %s117, 1
          %s361 = smul.addr %s360, 8
          %s362 = scalar_lea.vmem [#allocation2], %s361
          %364 = dma.done %s359, 128
        $region44: #{tpu_custom_call.1} parent=39 // pred_fallthru
          _
      $region40: #{tpu_custom_call.1} parent=5 // pred_fallthru
        _
    $region6: #{tpu_custom_call.1} parent=1 // loop_footer
      %s16 = sadd.s32 1, %s12
    $region7: #{tpu_custom_call.1} parent=1 // loop_footer_branch
      %11 = sbr.rel target = $region3
    $region8: #{tpu_custom_call.1} parent=1 // loop_exit
      _
    %365 = vsyncpa [#allocation3], 1
    %s366 = scalar_lea.sflag [#allocation3], 1
    %367 = vsyncpa %s366, 1

</llo_original>
